<compile_context>
chip_gen: v7x
topology: tpu7x:2x2x1
jax: 0.10.0
libtpu: 0.0.40
codegen_flags: <defaults>
</compile_context>

<pallas_src>
import numpy as np
import jax
import jax.numpy as jnp
from jax.experimental import pallas as pl
from jax.experimental.pallas import tpu as pltpu


# ----------------------------------------------------------------------------
# Pallas kernel: copy one lane-dense tile of the flattened tensor
# ----------------------------------------------------------------------------
def _flatten_copy_kernel(x_ref, o_ref):
    # x_ref / o_ref: (tb, tf) with tf a multiple of 128 (or the full feature
    # dim) -> unmasked full-width vector loads/stores, dense DMAs.
    o_ref[...] = x_ref[...]


# ----------------------------------------------------------------------------
# Tile selection: ~2 MiB tiles, lane-dense last dim, sublane-aligned batch dim
# ----------------------------------------------------------------------------
_TARGET_TILE_BYTES = 2 * 1024 * 1024  # double-buffered in+out -> <= 8 MiB VMEM


def _choose_tiles(B, feat, dtype):
    itemsize = jnp.dtype(dtype).itemsize
    # sublane packing multiple: 8 rows (f32), 16 (bf16), 32 (int8)
    sub = {4: 8, 2: 16, 1: 32}.get(itemsize, 8)

    # Feature (lane) tile: keep the full row when it fits the budget (or when
    # feat is not a 128-multiple -> full-extent exception).  Otherwise pick the
    # largest multiple-of-128 divisor of feat that keeps a `sub`-row tile under
    # the budget, so boundary tiles never exist and stores stay unmasked.
    if feat % 128 != 0 or feat * itemsize * sub <= _TARGET_TILE_BYTES:
        tf = feat
    else:
        tf = 128
        n128 = feat // 128
        for d in range(n128, 0, -1):
            if n128 % d == 0 and 128 * d * itemsize * sub <= _TARGET_TILE_BYTES:
                tf = 128 * d
                break

    # Batch (sublane) tile: a multiple of `sub` that divides B, sized against
    # the budget; otherwise fall back to the full batch (full-extent exception).
    row_bytes = max(tf * itemsize, 1)
    want_tb = max(sub, _TARGET_TILE_BYTES // row_bytes)
    if B <= want_tb or B % sub != 0:
        tb = B
    else:
        tb = sub
        nsub = B // sub
        for d in range(nsub, 0, -1):
            if nsub % d == 0 and sub * d <= want_tb:
                tb = sub * d
                break
    return tb, tf


# ----------------------------------------------------------------------------
# Wrapper
# ----------------------------------------------------------------------------
def flatten_forward(x):
    """Pallas-backed Flatten.forward: (B, d1, d2, ...) -> (B, d1*d2*...)."""
    B = x.shape[0]
    feat = 1
    for d in x.shape[1:]:
        feat *= d

    # x.view(B, -1) on contiguous memory is layout-free; do it in the wrapper
    # so the kernel sees a clean 2-D lane-dense slab.
    x2d = x.reshape(B, feat)

    tb, tf = _choose_tiles(B, feat, x.dtype)
    grid = (pl.cdiv(B, tb), pl.cdiv(feat, tf))

    return pl.pallas_call(
        _flatten_copy_kernel,
        out_shape=jax.ShapeDtypeStruct((B, feat), x.dtype),
        grid=grid,
        in_specs=[pl.BlockSpec((tb, tf), lambda i, j: (i, j))],
        out_specs=pl.BlockSpec((tb, tf), lambda i, j: (i, j)),
        # Donate the (already correctly laid-out) input buffer to the output:
        # no extra HBM allocation, and XLA may elide the copy entirely.
        input_output_aliases={0: 0},
        compiler_params=pltpu.CompilerParams(
            dimension_semantics=("parallel", "parallel")),
    )(x2d)


# ----------------------------------------------------------------------------
if __name__ == "__main__":
    B, C, H, W = 2, 4, 16, 16
    key = jax.random.PRNGKey(0)
    x = jax.random.normal(key, (B, C, H, W), jnp.float32)

    y = jax.jit(flatten_forward)(x)
    y = jax.block_until_ready(y)

    assert y.shape == (B, C * H * W)

    # Reference: exactly what x.view(x.size(0), -1) produces.
    ref = np.asarray(x).reshape(B, -1)
    np.testing.assert_allclose(np.asarray(y), ref, rtol=0, atol=0)
    print("KERNEL_OK")
</pallas_src>

<mosaic_0001>
module attributes {stable_mosaic.version = 11 : i64} {
  func.func @_flatten_copy_kernel(%arg0: i32, %arg1: i32, %arg2: memref<2x1024xf32, #tpu.memory_space<vmem>>, %arg3: memref<2x1024xf32, #tpu.memory_space<vmem>>) attributes {dimension_semantics = [#tpu.dimension_semantics<parallel>, #tpu.dimension_semantics<parallel>], iteration_bounds = array<i64: 1, 1>, scalar_prefetch = 0 : i64, scratch_operands = 0 : i64, tpu.core_type = #tpu.core_type<tc>, window_params = [{transform_indices = @transform_0, window_bounds = array<i64: 2, 1024>}, {transform_indices = @transform_1, window_bounds = array<i64: 2, 1024>}]} {
    %c0 = arith.constant 0 : index
    %c0_0 = arith.constant 0 : index
    %0 = vector.load %arg2[%c0, %c0_0] : memref<2x1024xf32, #tpu.memory_space<vmem>>, vector<2x1024xf32>
    %c0_1 = arith.constant 0 : index
    %c0_2 = arith.constant 0 : index
    %1 = vector.load %arg3[%c0_1, %c0_2] : memref<2x1024xf32, #tpu.memory_space<vmem>>, vector<2x1024xf32>
    tpu.vector_store %arg3[%c0_1, %c0_2], %0 {strides = array<i32>} : memref<2x1024xf32, #tpu.memory_space<vmem>>, vector<2x1024xf32>,
    return
  }
  func.func @transform_0(%arg0: i32, %arg1: i32) -> (i32, i32) {
    %c0_i32 = arith.constant 0 : i32
    return %arg0, %arg1 : i32, i32
  }
  func.func @transform_1(%arg0: i32, %arg1: i32) -> (i32, i32) {
    %c0_i32 = arith.constant 0 : i32
    return %arg0, %arg1 : i32, i32
  }
}

</mosaic_0001>

<llo_original>
// kernel: flatten_forward.1
$region0: #{flatten_forward.1}
  #allocation0 [shape = 'u32[]', space=smem, size = 0x4, offset = 0x4, fixed_abs, tag = 'smem constant byte address 0x4 - core index']
  #allocation1 [shape = 'u32[144,128]{1,0:T(1,128)}', space=vmem, size = 0x12000, scoped, tag = 'internal scratch']
  %s0 = inlined_call_operand.hbm [shape: f32[2,1024], index: 0, kind: input, shape index: {}, may-alias: {0,1}]
  %s1 = inlined_call_operand.hbm [shape: f32[2,1024], index: 1, kind: output, shape index: {}, may-alias: {0,1}]
  %s2 = sld [smem:[#allocation0]]
  $region18: #{flatten_forward.1} parent=0
    _
  %s4 = ssub.s32 1, %s2
  %s5 = scalar_select 0, %s4, %s2
  $region1: #{flatten_forward.1} parent=0
    #allocation2 [shape = 'u8[8192]{0}', space=vmem, size = 0x2000, scoped, tag = 'input window, operand 0, single buffered']
    #allocation3 [shape = 's32[1]{0}', space=sflag, size = 0x4, scoped, tag = 'scoped memory for flatten_forward.1']
    #allocation4 [shape = 's32[1]{0}', space=sflag, size = 0x4, scoped, tag = 'scoped memory for flatten_forward.1']
    #allocation5 [shape = 'u8[8192]{0}', space=vmem, size = 0x2000, scoped, tag = 'output window, operand 0, single buffered']
    %6 = vsyncpa [#allocation3], 0
    %7 = vsyncpa [#allocation4], 0
    // Predicated region
    $region2: #{flatten_forward.1} parent=1 // pred_check
      _
    $region3: #{flatten_forward.1} parent=1 // pred_check_branch
      %9 = sbr.rel (0) target = $region5
    $region4: #{flatten_forward.1} parent=1 // pred_region
      %s11 = ssub.s32 256, 256
      %12 = vsyncadd [#allocation3], %s11
      %s14 = sshll.u32 [#allocation2], 4
      %s15 = int_to_ptr.vmem [resolvable:$true] %s14
      %17 = dma.hbm_to_vmem [thread:$0]  %s0, 256, %s15, [#allocation3]
    $region5: #{flatten_forward.1} parent=1 // pred_fallthru
      _
    // Predicated region
    $region6: #{flatten_forward.1} parent=1 // pred_check
      _
    $region7: #{flatten_forward.1} parent=1 // pred_check_branch
      %19 = sbr.rel (0) target = $region9
    $region8: #{flatten_forward.1} parent=1 // pred_region
      %20 = dma.done [#allocation3], 256
    $region9: #{flatten_forward.1} parent=1 // pred_fallthru
      _
    %v21 = vld [vmem:[#allocation2] sm:$0xff]
    %v22 = vld [vmem:[#allocation2 + $0x8] sm:$0xff]
    %23 = vst [vmem:[#allocation5] sm:$0xff] %v21
    %24 = vst [vmem:[#allocation5 + $0x8] sm:$0xff] %v22
    // Predicated region
    $region10: #{flatten_forward.1} parent=1 // pred_check
      _
    $region11: #{flatten_forward.1} parent=1 // pred_check_branch
      %26 = sbr.rel (0) target = $region13
    $region12: #{flatten_forward.1} parent=1 // pred_region
      %s28 = ssub.s32 256, 256
      %29 = vsyncadd [#allocation4], %s28
      %s31 = sshll.u32 [#allocation5], 4
      %s32 = int_to_ptr.vmem [resolvable:$true] %s31
      %34 = dma.vmem_to_hbm [thread:$0]  %s32, 256, %s1, [#allocation4]
    $region13: #{flatten_forward.1} parent=1 // pred_fallthru
      _
    // Predicated region
    $region14: #{flatten_forward.1} parent=1 // pred_check
      _
    $region15: #{flatten_forward.1} parent=1 // pred_check_branch
      %36 = sbr.rel (0) target = $region17
    $region16: #{flatten_forward.1} parent=1 // pred_region
      %37 = dma.done [#allocation4], 256
    $region17: #{flatten_forward.1} parent=1 // pred_fallthru
      _
    %38 = vsyncpa [#allocation3], 1
    %39 = vsyncpa [#allocation4], 1

</llo_original>
